<compile_context>
chip_gen: v6e
topology: v6e:2x2x1
jax: 0.10.0
libtpu: 0.0.40
codegen_flags: <defaults>
</compile_context>

<pallas_src>
import jax
import jax.numpy as jnp
from jax import lax
from jax.experimental import pallas as pl
from jax.experimental.pallas import tpu as pltpu

_MIB = 1024 * 1024


def _cdiv(a, b):
    return -(-a // b)


def _round_up(a, m):
    return _cdiv(a, m) * m


def _round_down(a, m):
    return (a // m) * m


def _vmem_capacity_bytes(default=64 * _MIB):
    """Physical VMEM per TensorCore; conservative (v7x-sized) default if the
    query is unavailable."""
    try:
        cap = getattr(pltpu.get_tpu_info(), "vmem_capacity_bytes", None)
        if cap:
            return int(cap)
    except Exception:
        pass
    return default


# ----------------------------------------------------------------------------
# Kernels
# ----------------------------------------------------------------------------
def _single_k_kernel(x_ref, w_ref, b_ref, o_ref):
    """grid = (n_m,).  x_ref: (tm, D), w_ref: (1, D), b_ref: (1,) in SMEM,
    o_ref: (1, 1, tm) lane-dense output row."""
    x = x_ref[...].astype(jnp.float32)                       # (tm, D)
    w = w_ref[...].astype(jnp.float32)                       # (1, D) bcast over rows
    s = jnp.sum(x * w, axis=-1, keepdims=True) + b_ref[0]    # (tm, 1), f32 acc
    # Lane-dense store: one relayout of the small column into a 128-lane row.
    o_ref[...] = jnp.transpose(s)[None, ...].astype(o_ref.dtype)


def _make_multi_k_kernel(D, tk, n_k):
    """grid = (n_m [parallel], n_k [arbitrary/reduction]); tk % 128 == 0."""
    d_last = D - (n_k - 1) * tk          # valid columns in the last K block

    def kernel(x_ref, w_ref, b_ref, o_ref, acc_ref):
        k = pl.program_id(1)

        @pl.when(k == 0)
        def _init():
            acc_ref[...] = jnp.zeros_like(acc_ref)

        x = x_ref[...].astype(jnp.float32)                   # (tm, tk)
        w = w_ref[...].astype(jnp.float32)                   # (1, tk)
        prod = x * w                                         # VPU only

        if d_last != tk:
            # Last K block hangs past D; zero its stale tail columns.
            col = lax.broadcasted_iota(jnp.int32, prod.shape, 1)
            prod = jnp.where(k * tk + col < D, prod, 0.0)

        # Fold 128-lane groups with plain VPU adds into a lane-parallel
        # accumulator; keep the XLU cross-lane reduce out of the k loop.
        folded = prod[:, 0:128]
        for g in range(1, tk // 128):
            folded = folded + prod[:, g * 128:(g + 1) * 128]
        acc_ref[...] += folded                               # (tm, 128) f32

        @pl.when(k == n_k - 1)
        def _finalize():
            s = jnp.sum(acc_ref[...], axis=-1, keepdims=True) + b_ref[0]
            o_ref[...] = jnp.transpose(s)[None, ...].astype(o_ref.dtype)

    return kernel


# ----------------------------------------------------------------------------
# Wrapper
# ----------------------------------------------------------------------------
def linear_regressor(x, weight, bias=None, *, min_pallas_bytes=1 * _MIB,
                     tile_override=None, interpret=False):
    """Forward of LinearRegressor: y = x @ weight.T + bias.

    x: (..., D); weight: (1, D) or (D,) (PyTorch nn.Linear layout);
    bias: (1,) / scalar / None.  Returns (..., 1) in x.dtype.
    """
    orig_dtype = x.dtype
    lead = x.shape[:-1]
    D = x.shape[-1]
    x2 = x.reshape(-1, D)
    B = x2.shape[0]

    weight = jnp.asarray(weight).reshape(1, D)
    if bias is None:
        bias_arr = jnp.zeros((1,), jnp.float32)
    else:
        bias_arr = jnp.asarray(bias, jnp.float32).reshape(1)

    itemsize = jnp.dtype(x2.dtype).itemsize

    # ---- Tiny problems: launch + relayout overhead dominates; let XLA do it.
    #      (Pass min_pallas_bytes=0 to force the Pallas path.)
    if tile_override is None and B * D * itemsize < min_pallas_bytes:
        y = jnp.dot(x2.astype(jnp.float32), jnp.transpose(weight).astype(jnp.float32))
        y = (y + bias_arr[0]).astype(orig_dtype)
        return y.reshape(lead + (1,))

    # ---- Generation-aware block sizing --------------------------------------
    vmem_cap = _vmem_capacity_bytes()                  # 128 MiB v5e/v6e, 64 MiB v7x
    vmem_limit = max(32 * _MIB, vmem_cap - 16 * _MIB)
    usable = vmem_limit - 8 * _MIB                     # weight/out/acc/compiler slack
    # 2x double-buffered input block + up to two f32 block-sized temporaries
    # (upcast + product) inside the kernel body.
    max_block_elems = max(usable // (2 * itemsize + 8), 128 * 256)

    if tile_override is not None:
        tm, tk = tile_override
        n_k = _cdiv(D, tk)
        if n_k > 1:
            assert tk % 128 == 0, "K-tiled blocks must be lane-aligned"
        else:
            tk = D
        n_m = _cdiv(B, tm)
    else:
        # K (reduction) tiling: single block unless it can't fit beside >=128 rows.
        tk_cap = max(128, _round_down(max_block_elems // 128, 128))
        if D <= tk_cap:
            tk, n_k = D, 1
        else:
            n_k = _cdiv(D, tk_cap)
            tk = _round_up(_cdiv(D, n_k), 128)
            n_k = _cdiv(D, tk)

        # Batch (M) tiling from the block-element budget (no 1024-row cap).
        tm_cap = max(128, _round_down(max_block_elems // tk, 128))
        if B <= 256 and B <= tm_cap:
            tm = B                                     # exact single tile, no tail
        elif B <= 2 * tm_cap:
            # >= 2 tiles so both v7x TensorCores get work on the parallel axis.
            tm = min(tm_cap, _round_up(_cdiv(B, 2), 128))
        else:
            tm = tm_cap
        n_m = _cdiv(B, tm)

    out_dtype = orig_dtype
    cost = pl.CostEstimate(
        flops=2 * B * D,
        transcendentals=0,
        bytes_accessed=(B * D * itemsize
                        + D * jnp.dtype(weight.dtype).itemsize
                        + B * jnp.dtype(out_dtype).itemsize),
    )
    compiler_params = pltpu.CompilerParams(
        dimension_semantics=("parallel",) if n_k == 1 else ("parallel", "arbitrary"),
        vmem_limit_bytes=int(vmem_limit),
    )

    if n_k == 1:
        out_slab = pl.pallas_call(
            _single_k_kernel,
            out_shape=jax.ShapeDtypeStruct((n_m, 1, tm), out_dtype),
            grid_spec=pltpu.PrefetchScalarGridSpec(
                num_scalar_prefetch=0,
                grid=(n_m,),
                in_specs=[
                    pl.BlockSpec((tm, tk), lambda i: (i, 0)),           # x rows
                    pl.BlockSpec((1, tk), lambda i: (0, 0)),            # weight row
                    pl.BlockSpec(memory_space=pltpu.MemorySpace.SMEM),  # bias scalar
                ],
                out_specs=pl.BlockSpec((1, 1, tm), lambda i: (i, 0, 0)),
            ),
            compiler_params=compiler_params,
            cost_estimate=cost,
            interpret=interpret,
        )(x2, weight, bias_arr)
    else:
        kernel = _make_multi_k_kernel(D, tk, n_k)
        out_slab = pl.pallas_call(
            kernel,
            out_shape=jax.ShapeDtypeStruct((n_m, 1, tm), out_dtype),
            grid_spec=pltpu.PrefetchScalarGridSpec(
                num_scalar_prefetch=0,
                grid=(n_m, n_k),
                in_specs=[
                    pl.BlockSpec((tm, tk), lambda i, k: (i, k)),        # x tile
                    pl.BlockSpec((1, tk), lambda i, k: (0, k)),         # weight slice
                    pl.BlockSpec(memory_space=pltpu.MemorySpace.SMEM),  # bias scalar
                ],
                out_specs=pl.BlockSpec((1, 1, tm), lambda i, k: (i, 0, 0)),
                scratch_shapes=[pltpu.VMEM((tm, 128), jnp.float32)],
            ),
            compiler_params=compiler_params,
            cost_estimate=cost,
            interpret=interpret,
        )(x2, weight, bias_arr)

    # Free layout plumbing back to (B, 1); any boundary-block tail rows past B
    # (written from stale VMEM) are sliced off here.
    y = out_slab.reshape(-1)[:B].reshape(B, 1)
    return y.reshape(lead + (1,))


if __name__ == "__main__":
    key = jax.random.PRNGKey(0)
    k_x, k_w, k_b, k_x2 = jax.random.split(key, 4)

    # --- Small demo matching the module (batch=8, input_dim=32).  Force the
    #     Pallas path (the default heuristic would route this tiny shape to XLA).
    batch, input_dim = 8, 32
    bound = 1.0 / (input_dim ** 0.5)
    x = jax.random.normal(k_x, (batch, input_dim), dtype=jnp.float32)
    weight = jax.random.uniform(k_w, (1, input_dim), jnp.float32, -bound, bound)
    bias = jax.random.uniform(k_b, (1,), jnp.float32, -bound, bound)

    out = linear_regressor(x, weight, bias, min_pallas_bytes=0)
    out = jax.block_until_ready(out)
    ref = x @ weight.T + bias
    assert out.shape == (batch, 1), out.shape
    assert jnp.allclose(out, ref, atol=1e-5, rtol=1e-5)

    # --- Ragged shapes exercising the partial batch tile, K blocking with a
    #     masked tail column block, and the (tm, 128) accumulator path.
    B2, D2 = 200, 300
    x2 = jax.random.normal(k_x2, (B2, D2), dtype=jnp.float32)
    w2 = jax.random.uniform(k_w, (1, D2), jnp.float32, -1.0, 1.0) / (D2 ** 0.5)
    out2 = linear_regressor(x2, w2, bias, min_pallas_bytes=0,
                            tile_override=(128, 128))
    out2 = jax.block_until_ready(out2)
    ref2 = x2 @ w2.T + bias
    assert out2.shape == (B2, 1), out2.shape
    assert jnp.allclose(out2, ref2, atol=1e-4, rtol=1e-4)

    print("KERNEL_OK")
</pallas_src>

<mosaic_0001>
module attributes {stable_mosaic.version = 11 : i64} {
  func.func @_single_k_kernel(%arg0: i32, %arg1: memref<8x32xf32, #tpu.memory_space<vmem>>, %arg2: memref<1x32xf32, #tpu.memory_space<vmem>>, %arg3: memref<1xf32, #tpu.memory_space<smem>>, %arg4: memref<1x1x8xf32, #tpu.memory_space<vmem>>) attributes {dimension_semantics = [#tpu.dimension_semantics<parallel>], iteration_bounds = array<i64: 1>, scalar_prefetch = 0 : i64, scratch_operands = 0 : i64, tpu.core_type = #tpu.core_type<tc>, window_params = [{transform_indices = @transform_0, window_bounds = array<i64: 8, 32>}, {pipeline_mode = #tpu.pipeline_mode<synchronous>, transform_indices = @transform_1, window_bounds = array<i64: 1, 32>}, {transform_indices = @transform_2, window_bounds = array<i64: 1>}, {transform_indices = @transform_3, window_bounds = array<i64: 1, 1, 8>}]} {
    %c0 = arith.constant 0 : index
    %c0_0 = arith.constant 0 : index
    %0 = vector.load %arg1[%c0, %c0_0] : memref<8x32xf32, #tpu.memory_space<vmem>>, vector<8x32xf32>
    %c0_1 = arith.constant 0 : index
    %c0_2 = arith.constant 0 : index
    %1 = vector.load %arg2[%c0_1, %c0_2] : memref<1x32xf32, #tpu.memory_space<vmem>>, vector<1x32xf32>
    %2 = vector.broadcast %1 : vector<1x32xf32> to vector<8x32xf32>
    %3 = arith.mulf %0, %2 : vector<8x32xf32>
    %cst = arith.constant dense<0.000000e+00> : vector<8xf32>
    %4 = vector.multi_reduction <add>, %3, %cst [1] : vector<8x32xf32> to vector<8xf32>
    %5 = vector.shape_cast %4 : vector<8xf32> to vector<8x1xf32>
    %c0_3 = arith.constant 0 : index
    %6 = memref.load %arg3[%c0_3] : memref<1xf32, #tpu.memory_space<smem>>
    %7 = vector.broadcast %6 : f32 to vector<8x1xf32>
    %8 = arith.addf %5, %7 : vector<8x1xf32>
    %9 = tpu.transpose %8, [1, 0] : vector<8x1xf32> -> vector<1x8xf32>
    %10 = vector.shape_cast %9 : vector<1x8xf32> to vector<1x1x8xf32>
    %c0_4 = arith.constant 0 : index
    %c0_5 = arith.constant 0 : index
    %c0_6 = arith.constant 0 : index
    %11 = vector.load %arg4[%c0_4, %c0_5, %c0_6] : memref<1x1x8xf32, #tpu.memory_space<vmem>>, vector<1x1x8xf32>
    tpu.vector_store %arg4[%c0_4, %c0_5, %c0_6], %10 {strides = array<i32>} : memref<1x1x8xf32, #tpu.memory_space<vmem>>, vector<1x1x8xf32>,
    return
  }
  func.func @transform_0(%arg0: i32) -> (i32, i32) {
    %c0_i32 = arith.constant 0 : i32
    %c0_i32_0 = arith.constant 0 : i32
    return %arg0, %c0_i32 : i32, i32
  }
  func.func @transform_1(%arg0: i32) -> (i32, i32) {
    %c0_i32 = arith.constant 0 : i32
    %c0_i32_0 = arith.constant 0 : i32
    %c0_i32_1 = arith.constant 0 : i32
    return %c0_i32, %c0_i32_0 : i32, i32
  }
  func.func @transform_2(%arg0: i32) -> i32 {
    %c0_i32 = arith.constant 0 : i32
    %c0_i32_0 = arith.constant 0 : i32
    return %c0_i32 : i32
  }
  func.func @transform_3(%arg0: i32) -> (i32, i32, i32) {
    %c0_i32 = arith.constant 0 : i32
    %c0_i32_0 = arith.constant 0 : i32
    %c0_i32_1 = arith.constant 0 : i32
    return %arg0, %c0_i32, %c0_i32_0 : i32, i32, i32
  }
}

</mosaic_0001>

<llo_original>
// kernel: tpu_custom_call.1
$region0: #{tpu_custom_call.1}
  #allocation0 [shape = 'u32[]', space=smem, size = 0x4, offset = 0x4, fixed_abs, tag = 'smem constant byte address 0x4 - core index']
  #allocation1 [shape = 'u32[144,128]{1,0:T(1,128)}', space=vmem, size = 0x12000, scoped, tag = 'internal scratch']
  #allocation2 [shape = 'f32[1]{0:T(128)S(6)}', space=smem, size = 0x200, scoped, tag = 'scoped memory for tpu_custom_call.1']
  %s0 = inlined_call_operand.hbm [shape: f32[8,32], index: 0, kind: input, shape index: {}]
  %s1 = inlined_call_operand.vmem [shape: f32[1,32], index: 1, kind: input, shape index: {}]
  %s2 = inlined_call_operand.<no memory space> [shape: f32[1], index: 2, kind: input, shape index: {}]
  %s3 = inlined_call_operand.hbm [shape: f32[1,1,8], index: 3, kind: output, shape index: {}]
  %s4 = sld [smem:[#allocation0]]
  $region26: #{tpu_custom_call.1} parent=0
    _
  %s6 = ssub.s32 1, %s4
  %s7 = scalar_select 0, %s6, %s4
  %8 = sst [smem:[#allocation2]] %s2
  $region1: #{tpu_custom_call.1} parent=0
    #allocation3 [shape = 'u8[4096]{0}', space=vmem, size = 0x1000, scoped, tag = 'input window, operand 0, single buffered']
    #allocation4 [shape = 's32[1]{0}', space=sflag, size = 0x4, scoped, tag = 'scoped memory for tpu_custom_call.1']
    #allocation5 [shape = 's32[1]{0}', space=sflag, size = 0x4, scoped, tag = 'scoped memory for tpu_custom_call.1']
    #allocation6 [shape = 'u8[512]{0}', space=vmem, size = 0x400, scoped, tag = 'output window, operand 0, single buffered']
    %9 = vsyncpa [#allocation4], 0
    %10 = vsyncpa [#allocation5], 0
    // Predicated region
    $region2: #{tpu_custom_call.1} parent=1 // pred_check
      _
    $region3: #{tpu_custom_call.1} parent=1 // pred_check_branch
      %12 = sbr.rel (0) target = $region5
    $region4: #{tpu_custom_call.1} parent=1 // pred_region
      %s14 = ssub.s32 128, 128
      %15 = vsyncadd [#allocation4], %s14
      %s17 = sshll.u32 [#allocation3], 4
      %s18 = int_to_ptr.vmem [resolvable:$true] %s17
      %20 = dma.hbm_to_vmem [thread:$0]  %s0, 128, %s18, [#allocation4]
    $region5: #{tpu_custom_call.1} parent=1 // pred_fallthru
      _
    // Predicated region
    $region6: #{tpu_custom_call.1} parent=1 // pred_check
      _
    $region7: #{tpu_custom_call.1} parent=1 // pred_check_branch
      %22 = sbr.rel (0) target = $region9
    $region8: #{tpu_custom_call.1} parent=1 // pred_region
      _
    $region9: #{tpu_custom_call.1} parent=1 // pred_fallthru
      _
    // Predicated region
    $region10: #{tpu_custom_call.1} parent=1 // pred_check
      _
    $region11: #{tpu_custom_call.1} parent=1 // pred_check_branch
      %24 = sbr.rel (0) target = $region13
    $region12: #{tpu_custom_call.1} parent=1 // pred_region
      _
    $region13: #{tpu_custom_call.1} parent=1 // pred_fallthru
      _
    // Predicated region
    $region14: #{tpu_custom_call.1} parent=1 // pred_check
      _
    $region15: #{tpu_custom_call.1} parent=1 // pred_check_branch
      %26 = sbr.rel (0) target = $region17
    $region16: #{tpu_custom_call.1} parent=1 // pred_region
      %27 = dma.done [#allocation4], 128
    $region17: #{tpu_custom_call.1} parent=1 // pred_fallthru
      _
    %v28 = vld [vmem:[#allocation3] sm:$0xff]
    %v29 = vld [vmem:[%s1] sm:$0x1]
    %v31 = vlaneseq
    %v32 = vshrl.u32 %v31, 7
    %v33 = vsub.s32 0, %v32
    %v34 = vrot.slane %v29, %v33
    %v36 = vmul.f32 %v28, %v34
    %vm37 = vcmask 261120
    %v38 = vsel %vm37, %v36, 0.0
    %39 = vadd.xlane.f32.xlu0 %v38
    %v40 = vpop.xlane.xlu0 %39
    %s41 = sld [smem:[#allocation2]]
    %v42 = vstv %s41
    %v43 = vadd.f32 %v40, %v42
    %44 = vxpose.xlu0.b32.start [1/16] %v43, 128
    %45 = vxpose.xlu0.b32.cont [2/16] 0.0, 128
    %46 = vxpose.xlu0.b32.cont [3/16] 0.0, 128
    %47 = vxpose.xlu0.b32.cont [4/16] 0.0, 128
    %48 = vxpose.xlu0.b32.cont [5/16] 0.0, 128
    %49 = vxpose.xlu0.b32.cont [6/16] 0.0, 128
    %50 = vxpose.xlu0.b32.cont [7/16] 0.0, 128
    %51 = vxpose.xlu0.b32.cont [8/16] 0.0, 128
    %52 = vxpose.xlu0.b32.cont [9/16] 0.0, 128
    %53 = vxpose.xlu0.b32.cont [10/16] 0.0, 128
    %54 = vxpose.xlu0.b32.cont [11/16] 0.0, 128
    %55 = vxpose.xlu0.b32.cont [12/16] 0.0, 128
    %56 = vxpose.xlu0.b32.cont [13/16] 0.0, 128
    %57 = vxpose.xlu0.b32.cont [14/16] 0.0, 128
    %58 = vxpose.xlu0.b32.cont [15/16] 0.0, 128
    %59 = vxpose.xlu0.b32.end [16/16] 0.0, 128
    %v60 = vpop.trf.xlu0
    %v61 = vpop.trf.xlu0
    %v62 = vpop.trf.xlu0
    %v63 = vpop.trf.xlu0
    %v64 = vpop.trf.xlu0
    %v65 = vpop.trf.xlu0
    %v66 = vpop.trf.xlu0
    %v67 = vpop.trf.xlu0
    %v68 = vpop.trf.xlu0
    %v69 = vpop.trf.xlu0
    %v70 = vpop.trf.xlu0
    %v71 = vpop.trf.xlu0
    %v72 = vpop.trf.xlu0
    %v73 = vpop.trf.xlu0
    %v74 = vpop.trf.xlu0
    %v75 = vpop.trf.xlu0
    %vm76 = vcmask 57344
    %77 = vst.msk [vmem:[#allocation6] sm:$0x1] %vm76, %v60
    // Predicated region
    $region18: #{tpu_custom_call.1} parent=1 // pred_check
      _
    $region19: #{tpu_custom_call.1} parent=1 // pred_check_branch
      %79 = sbr.rel (0) target = $region21
    $region20: #{tpu_custom_call.1} parent=1 // pred_region
      %s81 = ssub.s32 16, 16
      %82 = vsyncadd [#allocation5], %s81
      %s84 = sshll.u32 [#allocation6], 4
      %s85 = int_to_ptr.vmem [resolvable:$true] %s84
      %87 = dma.vmem_to_hbm [thread:$0]  %s85, 16, %s3, [#allocation5]
    $region21: #{tpu_custom_call.1} parent=1 // pred_fallthru
      _
    // Predicated region
    $region22: #{tpu_custom_call.1} parent=1 // pred_check
      _
    $region23: #{tpu_custom_call.1} parent=1 // pred_check_branch
      %89 = sbr.rel (0) target = $region25
    $region24: #{tpu_custom_call.1} parent=1 // pred_region
      %90 = dma.done [#allocation5], 16
    $region25: #{tpu_custom_call.1} parent=1 // pred_fallthru
      _
    %91 = vsyncpa [#allocation4], 1
    %92 = vsyncpa [#allocation5], 1

</llo_original>
